<compile_context>
chip_gen: v6e
topology: v6e:2x2x1
jax: 0.10.0
libtpu: 0.0.40
codegen_flags: <defaults>
</compile_context>

<pallas_src>
import jax
import jax.numpy as jnp
from jax.experimental import pallas as pl
from jax.experimental.pallas import tpu as pltpu

IN1, H1, H2, OUT = 5, 7, 7, 4
FPAD = 8          # padded feature slots in the packed weight/bias slabs
SUB, LANE = 8, 128  # vreg sublane / lane extents


def mlp_kernel(w_ref, b_ref, x_ref, o_ref):
    """One batch tile: x_ref (IN1, 8, L) -> o_ref (OUT, 8, L).

    w_ref: SMEM (3*8*8,) flat packed weights, PyTorch (out, in) layout, zero padded.
    b_ref: SMEM (3*8,)   flat packed biases.
    Every feature slice is a full (8, L) block -> fully occupied vregs on the VPU.
    """
    rows = [x_ref[k] for k in range(IN1)]  # each (8, L)

    def dense(rows_in, layer, out_f, relu):
        wbase = layer * FPAD * FPAD
        bbase = layer * FPAD
        outs = []
        for j in range(out_f):
            acc = w_ref[wbase + j * FPAD + 0] * rows_in[0]
            for k in range(1, len(rows_in)):
                acc = acc + w_ref[wbase + j * FPAD + k] * rows_in[k]
            acc = acc + b_ref[bbase + j]
            if relu:
                acc = jnp.maximum(acc, 0.0)
            outs.append(acc)
        return outs

    h = dense(rows, 0, H1, True)
    h = dense(h, 1, H2, True)
    out = dense(h, 2, OUT, False)
    for j in range(OUT):
        o_ref[j] = out[j]  # full (8, L) store per output feature


def pack_params(params):
    """Pack PyTorch-layout params ((out, in) weights, (out,) biases) into flat SMEM slabs.

    Done once, outside the per-call path."""
    w_slab = jnp.zeros((3 * FPAD * FPAD,), jnp.float32)
    b_slab = jnp.zeros((3 * FPAD,), jnp.float32)
    for l, (w, b) in enumerate(params):
        wp = jnp.zeros((FPAD, FPAD), jnp.float32)
        wp = wp.at[: w.shape[0], : w.shape[1]].set(w.astype(jnp.float32))
        bp = jnp.zeros((FPAD,), jnp.float32).at[: b.shape[0]].set(b.astype(jnp.float32))
        w_slab = w_slab.at[l * FPAD * FPAD:(l + 1) * FPAD * FPAD].set(wp.reshape(-1))
        b_slab = b_slab.at[l * FPAD:(l + 1) * FPAD].set(bp)
    return w_slab, b_slab


def _pick_tile(batch):
    """Batch elements per grid step; multiple of 8*128.

    Large enough to bury the ~0.35us per-step overhead, capped so the
    double-buffered f32 footprint (~72*tile bytes) stays well inside v7x's
    64 MiB VMEM, and split into >=2 steps when possible so both v7x
    TensorCores get work (no-op on single-TC v5e/v6e)."""
    min_tile = SUB * LANE          # 1024 elements (one full (8,128) vreg per feature)
    max_tile = 128 * 1024          # ~9.4 MiB double-buffered -> fits all generations
    n_min = -(-batch // min_tile)  # ceil
    if n_min <= 1:
        return min_tile
    tile = -(-n_min // 2) * min_tile  # aim for >= 2 grid steps
    return min(tile, max_tile)


@jax.jit
def net_forward_packed(x, w_slab, b_slab):
    """Forward pass. x: (B, 5) float32 -> (B, 4) float32."""
    B = x.shape[0]
    tile = _pick_tile(B)                 # batch elements per grid step
    L = tile // SUB                      # lanes per sublane row (multiple of 128)
    Bp = -(-B // tile) * tile            # padded batch
    n_steps = Bp // tile

    # Single cast + transpose + pad + reshape pass: (B, IN1) -> (IN1, Bp/L, L).
    # If the producer/consumer can hand over feature-major (batch-last) data,
    # this and the final transpose can be dropped entirely.
    xt = jnp.transpose(x.astype(jnp.float32))        # (IN1, B)
    if Bp != B:
        xt = jnp.pad(xt, ((0, 0), (0, Bp - B)))
    xt = xt.reshape(IN1, Bp // L, L)

    out_t = pl.pallas_call(
        mlp_kernel,
        out_shape=jax.ShapeDtypeStruct((OUT, Bp // L, L), jnp.float32),
        grid=(n_steps,),
        in_specs=[
            pl.BlockSpec(memory_space=pltpu.MemorySpace.SMEM),   # packed weights (resident)
            pl.BlockSpec(memory_space=pltpu.MemorySpace.SMEM),   # packed biases  (resident)
            pl.BlockSpec((IN1, SUB, L), lambda i: (0, i, 0)),    # x tile: (IN1, 8, L)
        ],
        out_specs=pl.BlockSpec((OUT, SUB, L), lambda i: (0, i, 0)),  # y tile: (OUT, 8, L)
        compiler_params=pltpu.CompilerParams(
            dimension_semantics=("parallel",),        # independent batch tiles (v7x megacore)
            vmem_limit_bytes=32 * 1024 * 1024,        # explicit headroom, safe on v7x's 64 MiB
        ),
    )(w_slab, b_slab, xt)

    # (OUT, Bp/L, L) -> (OUT, Bp) -> drop padding -> (B, OUT)
    return out_t.reshape(OUT, Bp)[:, :B].T


def init_params(key):
    # Deterministic init mimicking nn.Linear: weight (out, in), bias (out,).
    def linear(k, in_f, out_f):
        kw, kb = jax.random.split(k)
        bound = 1.0 / jnp.sqrt(in_f)
        w = jax.random.uniform(kw, (out_f, in_f), jnp.float32, -bound, bound)
        b = jax.random.uniform(kb, (out_f,), jnp.float32, -bound, bound)
        return w, b

    k1, k2, k3 = jax.random.split(key, 3)
    return (linear(k1, IN1, H1), linear(k2, H1, H2), linear(k3, H2, OUT))


def net_ref(x, params):
    (w1, b1), (w2, b2), (w3, b3) = params
    h = jnp.maximum(x @ w1.T + b1, 0.0)
    h = jnp.maximum(h @ w2.T + b2, 0.0)
    return h @ w3.T + b3


if __name__ == "__main__":
    key = jax.random.PRNGKey(0)
    kx, kp = jax.random.split(key)
    B = 256
    x = jax.random.normal(kx, (B, IN1), jnp.float32)
    params = init_params(kp)

    # One-time parameter packing (hoisted out of the per-call path).
    w_slab, b_slab = pack_params(params)

    out = jax.block_until_ready(net_forward_packed(x, w_slab, b_slab))
    ref = net_ref(x, params)
    assert out.shape == (B, OUT)
    assert jnp.allclose(out, ref, atol=1e-5, rtol=1e-5)
    print("KERNEL_OK")
</pallas_src>

<mosaic_0001>
module attributes {stable_mosaic.version = 11 : i64} {
  func.func @mlp_kernel(%arg0: i32, %arg1: memref<192xf32, #tpu.memory_space<smem>>, %arg2: memref<24xf32, #tpu.memory_space<smem>>, %arg3: memref<5x8x128xf32, #tpu.memory_space<vmem>>, %arg4: memref<4x8x128xf32, #tpu.memory_space<vmem>>) attributes {dimension_semantics = [#tpu.dimension_semantics<parallel>], iteration_bounds = array<i64: 1>, scalar_prefetch = 0 : i64, scratch_operands = 0 : i64, tpu.core_type = #tpu.core_type<tc>, window_params = [{transform_indices = @transform_0, window_bounds = array<i64: 192>}, {transform_indices = @transform_1, window_bounds = array<i64: 24>}, {transform_indices = @transform_2, window_bounds = array<i64: 5, 8, 128>}, {transform_indices = @transform_3, window_bounds = array<i64: 4, 8, 128>}]} {
    %c0 = arith.constant 0 : index
    %c0_0 = arith.constant 0 : index
    %c0_1 = arith.constant 0 : index
    %0 = vector.load %arg3[%c0, %c0_0, %c0_1] : memref<5x8x128xf32, #tpu.memory_space<vmem>>, vector<1x8x128xf32>
    %1 = vector.shape_cast %0 : vector<1x8x128xf32> to vector<8x128xf32>
    %c1 = arith.constant 1 : index
    %c0_2 = arith.constant 0 : index
    %c0_3 = arith.constant 0 : index
    %2 = vector.load %arg3[%c1, %c0_2, %c0_3] : memref<5x8x128xf32, #tpu.memory_space<vmem>>, vector<1x8x128xf32>
    %3 = vector.shape_cast %2 : vector<1x8x128xf32> to vector<8x128xf32>
    %c2 = arith.constant 2 : index
    %c0_4 = arith.constant 0 : index
    %c0_5 = arith.constant 0 : index
    %4 = vector.load %arg3[%c2, %c0_4, %c0_5] : memref<5x8x128xf32, #tpu.memory_space<vmem>>, vector<1x8x128xf32>
    %5 = vector.shape_cast %4 : vector<1x8x128xf32> to vector<8x128xf32>
    %c3 = arith.constant 3 : index
    %c0_6 = arith.constant 0 : index
    %c0_7 = arith.constant 0 : index
    %6 = vector.load %arg3[%c3, %c0_6, %c0_7] : memref<5x8x128xf32, #tpu.memory_space<vmem>>, vector<1x8x128xf32>
    %7 = vector.shape_cast %6 : vector<1x8x128xf32> to vector<8x128xf32>
    %c4 = arith.constant 4 : index
    %c0_8 = arith.constant 0 : index
    %c0_9 = arith.constant 0 : index
    %8 = vector.load %arg3[%c4, %c0_8, %c0_9] : memref<5x8x128xf32, #tpu.memory_space<vmem>>, vector<1x8x128xf32>
    %9 = vector.shape_cast %8 : vector<1x8x128xf32> to vector<8x128xf32>
    %c0_10 = arith.constant 0 : index
    %10 = memref.load %arg1[%c0_10] : memref<192xf32, #tpu.memory_space<smem>>
    %11 = vector.broadcast %10 : f32 to vector<8x128xf32>
    %12 = arith.mulf %11, %1 : vector<8x128xf32>
    %c1_11 = arith.constant 1 : index
    %13 = memref.load %arg1[%c1_11] : memref<192xf32, #tpu.memory_space<smem>>
    %14 = vector.broadcast %13 : f32 to vector<8x128xf32>
    %15 = arith.mulf %14, %3 : vector<8x128xf32>
    %16 = arith.addf %12, %15 : vector<8x128xf32>
    %c2_12 = arith.constant 2 : index
    %17 = memref.load %arg1[%c2_12] : memref<192xf32, #tpu.memory_space<smem>>
    %18 = vector.broadcast %17 : f32 to vector<8x128xf32>
    %19 = arith.mulf %18, %5 : vector<8x128xf32>
    %20 = arith.addf %16, %19 : vector<8x128xf32>
    %c3_13 = arith.constant 3 : index
    %21 = memref.load %arg1[%c3_13] : memref<192xf32, #tpu.memory_space<smem>>
    %22 = vector.broadcast %21 : f32 to vector<8x128xf32>
    %23 = arith.mulf %22, %7 : vector<8x128xf32>
    %24 = arith.addf %20, %23 : vector<8x128xf32>
    %c4_14 = arith.constant 4 : index
    %25 = memref.load %arg1[%c4_14] : memref<192xf32, #tpu.memory_space<smem>>
    %26 = vector.broadcast %25 : f32 to vector<8x128xf32>
    %27 = arith.mulf %26, %9 : vector<8x128xf32>
    %28 = arith.addf %24, %27 : vector<8x128xf32>
    %c0_15 = arith.constant 0 : index
    %29 = memref.load %arg2[%c0_15] : memref<24xf32, #tpu.memory_space<smem>>
    %30 = vector.broadcast %29 : f32 to vector<8x128xf32>
    %31 = arith.addf %28, %30 : vector<8x128xf32>
    %cst = arith.constant 0.000000e+00 : f32
    %32 = vector.broadcast %cst : f32 to vector<8x128xf32>
    %33 = arith.maximumf %31, %32 : vector<8x128xf32>
    %c8 = arith.constant 8 : index
    %34 = memref.load %arg1[%c8] : memref<192xf32, #tpu.memory_space<smem>>
    %35 = vector.broadcast %34 : f32 to vector<8x128xf32>
    %36 = arith.mulf %35, %1 : vector<8x128xf32>
    %c9 = arith.constant 9 : index
    %37 = memref.load %arg1[%c9] : memref<192xf32, #tpu.memory_space<smem>>
    %38 = vector.broadcast %37 : f32 to vector<8x128xf32>
    %39 = arith.mulf %38, %3 : vector<8x128xf32>
    %40 = arith.addf %36, %39 : vector<8x128xf32>
    %c10 = arith.constant 10 : index
    %41 = memref.load %arg1[%c10] : memref<192xf32, #tpu.memory_space<smem>>
    %42 = vector.broadcast %41 : f32 to vector<8x128xf32>
    %43 = arith.mulf %42, %5 : vector<8x128xf32>
    %44 = arith.addf %40, %43 : vector<8x128xf32>
    %c11 = arith.constant 11 : index
    %45 = memref.load %arg1[%c11] : memref<192xf32, #tpu.memory_space<smem>>
    %46 = vector.broadcast %45 : f32 to vector<8x128xf32>
    %47 = arith.mulf %46, %7 : vector<8x128xf32>
    %48 = arith.addf %44, %47 : vector<8x128xf32>
    %c12 = arith.constant 12 : index
    %49 = memref.load %arg1[%c12] : memref<192xf32, #tpu.memory_space<smem>>
    %50 = vector.broadcast %49 : f32 to vector<8x128xf32>
    %51 = arith.mulf %50, %9 : vector<8x128xf32>
    %52 = arith.addf %48, %51 : vector<8x128xf32>
    %c1_16 = arith.constant 1 : index
    %53 = memref.load %arg2[%c1_16] : memref<24xf32, #tpu.memory_space<smem>>
    %54 = vector.broadcast %53 : f32 to vector<8x128xf32>
    %55 = arith.addf %52, %54 : vector<8x128xf32>
    %cst_17 = arith.constant 0.000000e+00 : f32
    %56 = vector.broadcast %cst_17 : f32 to vector<8x128xf32>
    %57 = arith.maximumf %55, %56 : vector<8x128xf32>
    %c16 = arith.constant 16 : index
    %58 = memref.load %arg1[%c16] : memref<192xf32, #tpu.memory_space<smem>>
    %59 = vector.broadcast %58 : f32 to vector<8x128xf32>
    %60 = arith.mulf %59, %1 : vector<8x128xf32>
    %c17 = arith.constant 17 : index
    %61 = memref.load %arg1[%c17] : memref<192xf32, #tpu.memory_space<smem>>
    %62 = vector.broadcast %61 : f32 to vector<8x128xf32>
    %63 = arith.mulf %62, %3 : vector<8x128xf32>
    %64 = arith.addf %60, %63 : vector<8x128xf32>
    %c18 = arith.constant 18 : index
    %65 = memref.load %arg1[%c18] : memref<192xf32, #tpu.memory_space<smem>>
    %66 = vector.broadcast %65 : f32 to vector<8x128xf32>
    %67 = arith.mulf %66, %5 : vector<8x128xf32>
    %68 = arith.addf %64, %67 : vector<8x128xf32>
    %c19 = arith.constant 19 : index
    %69 = memref.load %arg1[%c19] : memref<192xf32, #tpu.memory_space<smem>>
    %70 = vector.broadcast %69 : f32 to vector<8x128xf32>
    %71 = arith.mulf %70, %7 : vector<8x128xf32>
    %72 = arith.addf %68, %71 : vector<8x128xf32>
    %c20 = arith.constant 20 : index
    %73 = memref.load %arg1[%c20] : memref<192xf32, #tpu.memory_space<smem>>
    %74 = vector.broadcast %73 : f32 to vector<8x128xf32>
    %75 = arith.mulf %74, %9 : vector<8x128xf32>
    %76 = arith.addf %72, %75 : vector<8x128xf32>
    %c2_18 = arith.constant 2 : index
    %77 = memref.load %arg2[%c2_18] : memref<24xf32, #tpu.memory_space<smem>>
    %78 = vector.broadcast %77 : f32 to vector<8x128xf32>
    %79 = arith.addf %76, %78 : vector<8x128xf32>
    %cst_19 = arith.constant 0.000000e+00 : f32
    %80 = vector.broadcast %cst_19 : f32 to vector<8x128xf32>
    %81 = arith.maximumf %79, %80 : vector<8x128xf32>
    %c24 = arith.constant 24 : index
    %82 = memref.load %arg1[%c24] : memref<192xf32, #tpu.memory_space<smem>>
    %83 = vector.broadcast %82 : f32 to vector<8x128xf32>
    %84 = arith.mulf %83, %1 : vector<8x128xf32>
    %c25 = arith.constant 25 : index
    %85 = memref.load %arg1[%c25] : memref<192xf32, #tpu.memory_space<smem>>
    %86 = vector.broadcast %85 : f32 to vector<8x128xf32>
    %87 = arith.mulf %86, %3 : vector<8x128xf32>
    %88 = arith.addf %84, %87 : vector<8x128xf32>
    %c26 = arith.constant 26 : index
    %89 = memref.load %arg1[%c26] : memref<192xf32, #tpu.memory_space<smem>>
    %90 = vector.broadcast %89 : f32 to vector<8x128xf32>
    %91 = arith.mulf %90, %5 : vector<8x128xf32>
    %92 = arith.addf %88, %91 : vector<8x128xf32>
    %c27 = arith.constant 27 : index
    %93 = memref.load %arg1[%c27] : memref<192xf32, #tpu.memory_space<smem>>
    %94 = vector.broadcast %93 : f32 to vector<8x128xf32>
    %95 = arith.mulf %94, %7 : vector<8x128xf32>
    %96 = arith.addf %92, %95 : vector<8x128xf32>
    %c28 = arith.constant 28 : index
    %97 = memref.load %arg1[%c28] : memref<192xf32, #tpu.memory_space<smem>>
    %98 = vector.broadcast %97 : f32 to vector<8x128xf32>
    %99 = arith.mulf %98, %9 : vector<8x128xf32>
    %100 = arith.addf %96, %99 : vector<8x128xf32>
    %c3_20 = arith.constant 3 : index
    %101 = memref.load %arg2[%c3_20] : memref<24xf32, #tpu.memory_space<smem>>
    %102 = vector.broadcast %101 : f32 to vector<8x128xf32>
    %103 = arith.addf %100, %102 : vector<8x128xf32>
    %cst_21 = arith.constant 0.000000e+00 : f32
    %104 = vector.broadcast %cst_21 : f32 to vector<8x128xf32>
    %105 = arith.maximumf %103, %104 : vector<8x128xf32>
    %c32 = arith.constant 32 : index
    %106 = memref.load %arg1[%c32] : memref<192xf32, #tpu.memory_space<smem>>
    %107 = vector.broadcast %106 : f32 to vector<8x128xf32>
    %108 = arith.mulf %107, %1 : vector<8x128xf32>
    %c33 = arith.constant 33 : index
    %109 = memref.load %arg1[%c33] : memref<192xf32, #tpu.memory_space<smem>>
    %110 = vector.broadcast %109 : f32 to vector<8x128xf32>
    %111 = arith.mulf %110, %3 : vector<8x128xf32>
    %112 = arith.addf %108, %111 : vector<8x128xf32>
    %c34 = arith.constant 34 : index
    %113 = memref.load %arg1[%c34] : memref<192xf32, #tpu.memory_space<smem>>
    %114 = vector.broadcast %113 : f32 to vector<8x128xf32>
    %115 = arith.mulf %114, %5 : vector<8x128xf32>
    %116 = arith.addf %112, %115 : vector<8x128xf32>
    %c35 = arith.constant 35 : index
    %117 = memref.load %arg1[%c35] : memref<192xf32, #tpu.memory_space<smem>>
    %118 = vector.broadcast %117 : f32 to vector<8x128xf32>
    %119 = arith.mulf %118, %7 : vector<8x128xf32>
    %120 = arith.addf %116, %119 : vector<8x128xf32>
    %c36 = arith.constant 36 : index
    %121 = memref.load %arg1[%c36] : memref<192xf32, #tpu.memory_space<smem>>
    %122 = vector.broadcast %121 : f32 to vector<8x128xf32>
    %123 = arith.mulf %122, %9 : vector<8x128xf32>
    %124 = arith.addf %120, %123 : vector<8x128xf32>
    %c4_22 = arith.constant 4 : index
    %125 = memref.load %arg2[%c4_22] : memref<24xf32, #tpu.memory_space<smem>>
    %126 = vector.broadcast %125 : f32 to vector<8x128xf32>
    %127 = arith.addf %124, %126 : vector<8x128xf32>
    %cst_23 = arith.constant 0.000000e+00 : f32
    %128 = vector.broadcast %cst_23 : f32 to vector<8x128xf32>
    %129 = arith.maximumf %127, %128 : vector<8x128xf32>
    %c40 = arith.constant 40 : index
    %130 = memref.load %arg1[%c40] : memref<192xf32, #tpu.memory_space<smem>>
    %131 = vector.broadcast %130 : f32 to vector<8x128xf32>
    %132 = arith.mulf %131, %1 : vector<8x128xf32>
    %c41 = arith.constant 41 : index
    %133 = memref.load %arg1[%c41] : memref<192xf32, #tpu.memory_space<smem>>
    %134 = vector.broadcast %133 : f32 to vector<8x128xf32>
    %135 = arith.mulf %134, %3 : vector<8x128xf32>
    %136 = arith.addf %132, %135 : vector<8x128xf32>
    %c42 = arith.constant 42 : index
    %137 = memref.load %arg1[%c42] : memref<192xf32, #tpu.memory_space<smem>>
    %138 = vector.broadcast %137 : f32 to vector<8x128xf32>
    %139 = arith.mulf %138, %5 : vector<8x128xf32>
    %140 = arith.addf %136, %139 : vector<8x128xf32>
    %c43 = arith.constant 43 : index
    %141 = memref.load %arg1[%c43] : memref<192xf32, #tpu.memory_space<smem>>
    %142 = vector.broadcast %141 : f32 to vector<8x128xf32>
    %143 = arith.mulf %142, %7 : vector<8x128xf32>
    %144 = arith.addf %140, %143 : vector<8x128xf32>
    %c44 = arith.constant 44 : index
    %145 = memref.load %arg1[%c44] : memref<192xf32, #tpu.memory_space<smem>>
    %146 = vector.broadcast %145 : f32 to vector<8x128xf32>
    %147 = arith.mulf %146, %9 : vector<8x128xf32>
    %148 = arith.addf %144, %147 : vector<8x128xf32>
    %c5 = arith.constant 5 : index
    %149 = memref.load %arg2[%c5] : memref<24xf32, #tpu.memory_space<smem>>
    %150 = vector.broadcast %149 : f32 to vector<8x128xf32>
    %151 = arith.addf %148, %150 : vector<8x128xf32>
    %cst_24 = arith.constant 0.000000e+00 : f32
    %152 = vector.broadcast %cst_24 : f32 to vector<8x128xf32>
    %153 = arith.maximumf %151, %152 : vector<8x128xf32>
    %c48 = arith.constant 48 : index
    %154 = memref.load %arg1[%c48] : memref<192xf32, #tpu.memory_space<smem>>
    %155 = vector.broadcast %154 : f32 to vector<8x128xf32>
    %156 = arith.mulf %155, %1 : vector<8x128xf32>
    %c49 = arith.constant 49 : index
    %157 = memref.load %arg1[%c49] : memref<192xf32, #tpu.memory_space<smem>>
    %158 = vector.broadcast %157 : f32 to vector<8x128xf32>
    %159 = arith.mulf %158, %3 : vector<8x128xf32>
    %160 = arith.addf %156, %159 : vector<8x128xf32>
    %c50 = arith.constant 50 : index
    %161 = memref.load %arg1[%c50] : memref<192xf32, #tpu.memory_space<smem>>
    %162 = vector.broadcast %161 : f32 to vector<8x128xf32>
    %163 = arith.mulf %162, %5 : vector<8x128xf32>
    %164 = arith.addf %160, %163 : vector<8x128xf32>
    %c51 = arith.constant 51 : index
    %165 = memref.load %arg1[%c51] : memref<192xf32, #tpu.memory_space<smem>>
    %166 = vector.broadcast %165 : f32 to vector<8x128xf32>
    %167 = arith.mulf %166, %7 : vector<8x128xf32>
    %168 = arith.addf %164, %167 : vector<8x128xf32>
    %c52 = arith.constant 52 : index
    %169 = memref.load %arg1[%c52] : memref<192xf32, #tpu.memory_space<smem>>
    %170 = vector.broadcast %169 : f32 to vector<8x128xf32>
    %171 = arith.mulf %170, %9 : vector<8x128xf32>
    %172 = arith.addf %168, %171 : vector<8x128xf32>
    %c6 = arith.constant 6 : index
    %173 = memref.load %arg2[%c6] : memref<24xf32, #tpu.memory_space<smem>>
    %174 = vector.broadcast %173 : f32 to vector<8x128xf32>
    %175 = arith.addf %172, %174 : vector<8x128xf32>
    %cst_25 = arith.constant 0.000000e+00 : f32
    %176 = vector.broadcast %cst_25 : f32 to vector<8x128xf32>
    %177 = arith.maximumf %175, %176 : vector<8x128xf32>
    %c64 = arith.constant 64 : index
    %178 = memref.load %arg1[%c64] : memref<192xf32, #tpu.memory_space<smem>>
    %179 = vector.broadcast %178 : f32 to vector<8x128xf32>
    %180 = arith.mulf %179, %33 : vector<8x128xf32>
    %c65 = arith.constant 65 : index
    %181 = memref.load %arg1[%c65] : memref<192xf32, #tpu.memory_space<smem>>
    %182 = vector.broadcast %181 : f32 to vector<8x128xf32>
    %183 = arith.mulf %182, %57 : vector<8x128xf32>
    %184 = arith.addf %180, %183 : vector<8x128xf32>
    %c66 = arith.constant 66 : index
    %185 = memref.load %arg1[%c66] : memref<192xf32, #tpu.memory_space<smem>>
    %186 = vector.broadcast %185 : f32 to vector<8x128xf32>
    %187 = arith.mulf %186, %81 : vector<8x128xf32>
    %188 = arith.addf %184, %187 : vector<8x128xf32>
    %c67 = arith.constant 67 : index
    %189 = memref.load %arg1[%c67] : memref<192xf32, #tpu.memory_space<smem>>
    %190 = vector.broadcast %189 : f32 to vector<8x128xf32>
    %191 = arith.mulf %190, %105 : vector<8x128xf32>
    %192 = arith.addf %188, %191 : vector<8x128xf32>
    %c68 = arith.constant 68 : index
    %193 = memref.load %arg1[%c68] : memref<192xf32, #tpu.memory_space<smem>>
    %194 = vector.broadcast %193 : f32 to vector<8x128xf32>
    %195 = arith.mulf %194, %129 : vector<8x128xf32>
    %196 = arith.addf %192, %195 : vector<8x128xf32>
    %c69 = arith.constant 69 : index
    %197 = memref.load %arg1[%c69] : memref<192xf32, #tpu.memory_space<smem>>
    %198 = vector.broadcast %197 : f32 to vector<8x128xf32>
    %199 = arith.mulf %198, %153 : vector<8x128xf32>
    %200 = arith.addf %196, %199 : vector<8x128xf32>
    %c70 = arith.constant 70 : index
    %201 = memref.load %arg1[%c70] : memref<192xf32, #tpu.memory_space<smem>>
    %202 = vector.broadcast %201 : f32 to vector<8x128xf32>
    %203 = arith.mulf %202, %177 : vector<8x128xf32>
    %204 = arith.addf %200, %203 : vector<8x128xf32>
    %c8_26 = arith.constant 8 : index
    %205 = memref.load %arg2[%c8_26] : memref<24xf32, #tpu.memory_space<smem>>
    %206 = vector.broadcast %205 : f32 to vector<8x128xf32>
    %207 = arith.addf %204, %206 : vector<8x128xf32>
    %cst_27 = arith.constant 0.000000e+00 : f32
    %208 = vector.broadcast %cst_27 : f32 to vector<8x128xf32>
    %209 = arith.maximumf %207, %208 : vector<8x128xf32>
    %c72 = arith.constant 72 : index
    %210 = memref.load %arg1[%c72] : memref<192xf32, #tpu.memory_space<smem>>
    %211 = vector.broadcast %210 : f32 to vector<8x128xf32>
    %212 = arith.mulf %211, %33 : vector<8x128xf32>
    %c73 = arith.constant 73 : index
    %213 = memref.load %arg1[%c73] : memref<192xf32, #tpu.memory_space<smem>>
    %214 = vector.broadcast %213 : f32 to vector<8x128xf32>
    %215 = arith.mulf %214, %57 : vector<8x128xf32>
    %216 = arith.addf %212, %215 : vector<8x128xf32>
    %c74 = arith.constant 74 : index
    %217 = memref.load %arg1[%c74] : memref<192xf32, #tpu.memory_space<smem>>
    %218 = vector.broadcast %217 : f32 to vector<8x128xf32>
    %219 = arith.mulf %218, %81 : vector<8x128xf32>
    %220 = arith.addf %216, %219 : vector<8x128xf32>
    %c75 = arith.constant 75 : index
    %221 = memref.load %arg1[%c75] : memref<192xf32, #tpu.memory_space<smem>>
    %222 = vector.broadcast %221 : f32 to vector<8x128xf32>
    %223 = arith.mulf %222, %105 : vector<8x128xf32>
    %224 = arith.addf %220, %223 : vector<8x128xf32>
    %c76 = arith.constant 76 : index
    %225 = memref.load %arg1[%c76] : memref<192xf32, #tpu.memory_space<smem>>
    %226 = vector.broadcast %225 : f32 to vector<8x128xf32>
    %227 = arith.mulf %226, %129 : vector<8x128xf32>
    %228 = arith.addf %224, %227 : vector<8x128xf32>
    %c77 = arith.constant 77 : index
    %229 = memref.load %arg1[%c77] : memref<192xf32, #tpu.memory_space<smem>>
    %230 = vector.broadcast %229 : f32 to vector<8x128xf32>
    %231 = arith.mulf %230, %153 : vector<8x128xf32>
    %232 = arith.addf %228, %231 : vector<8x128xf32>
    %c78 = arith.constant 78 : index
    %233 = memref.load %arg1[%c78] : memref<192xf32, #tpu.memory_space<smem>>
    %234 = vector.broadcast %233 : f32 to vector<8x128xf32>
    %235 = arith.mulf %234, %177 : vector<8x128xf32>
    %236 = arith.addf %232, %235 : vector<8x128xf32>
    %c9_28 = arith.constant 9 : index
    %237 = memref.load %arg2[%c9_28] : memref<24xf32, #tpu.memory_space<smem>>
    %238 = vector.broadcast %237 : f32 to vector<8x128xf32>
    %239 = arith.addf %236, %238 : vector<8x128xf32>
    %cst_29 = arith.constant 0.000000e+00 : f32
    %240 = vector.broadcast %cst_29 : f32 to vector<8x128xf32>
    %241 = arith.maximumf %239, %240 : vector<8x128xf32>
    %c80 = arith.constant 80 : index
    %242 = memref.load %arg1[%c80] : memref<192xf32, #tpu.memory_space<smem>>
    %243 = vector.broadcast %242 : f32 to vector<8x128xf32>
    %244 = arith.mulf %243, %33 : vector<8x128xf32>
    %c81 = arith.constant 81 : index
    %245 = memref.load %arg1[%c81] : memref<192xf32, #tpu.memory_space<smem>>
    %246 = vector.broadcast %245 : f32 to vector<8x128xf32>
    %247 = arith.mulf %246, %57 : vector<8x128xf32>
    %248 = arith.addf %244, %247 : vector<8x128xf32>
    %c82 = arith.constant 82 : index
    %249 = memref.load %arg1[%c82] : memref<192xf32, #tpu.memory_space<smem>>
    %250 = vector.broadcast %249 : f32 to vector<8x128xf32>
    %251 = arith.mulf %250, %81 : vector<8x128xf32>
    %252 = arith.addf %248, %251 : vector<8x128xf32>
    %c83 = arith.constant 83 : index
    %253 = memref.load %arg1[%c83] : memref<192xf32, #tpu.memory_space<smem>>
    %254 = vector.broadcast %253 : f32 to vector<8x128xf32>
    %255 = arith.mulf %254, %105 : vector<8x128xf32>
    %256 = arith.addf %252, %255 : vector<8x128xf32>
    %c84 = arith.constant 84 : index
    %257 = memref.load %arg1[%c84] : memref<192xf32, #tpu.memory_space<smem>>
    %258 = vector.broadcast %257 : f32 to vector<8x128xf32>
    %259 = arith.mulf %258, %129 : vector<8x128xf32>
    %260 = arith.addf %256, %259 : vector<8x128xf32>
    %c85 = arith.constant 85 : index
    %261 = memref.load %arg1[%c85] : memref<192xf32, #tpu.memory_space<smem>>
    %262 = vector.broadcast %261 : f32 to vector<8x128xf32>
    %263 = arith.mulf %262, %153 : vector<8x128xf32>
    %264 = arith.addf %260, %263 : vector<8x128xf32>
    %c86 = arith.constant 86 : index
    %265 = memref.load %arg1[%c86] : memref<192xf32, #tpu.memory_space<smem>>
    %266 = vector.broadcast %265 : f32 to vector<8x128xf32>
    %267 = arith.mulf %266, %177 : vector<8x128xf32>
    %268 = arith.addf %264, %267 : vector<8x128xf32>
    %c10_30 = arith.constant 10 : index
    %269 = memref.load %arg2[%c10_30] : memref<24xf32, #tpu.memory_space<smem>>
    %270 = vector.broadcast %269 : f32 to vector<8x128xf32>
    %271 = arith.addf %268, %270 : vector<8x128xf32>
    %cst_31 = arith.constant 0.000000e+00 : f32
    %272 = vector.broadcast %cst_31 : f32 to vector<8x128xf32>
    %273 = arith.maximumf %271, %272 : vector<8x128xf32>
    %c88 = arith.constant 88 : index
    %274 = memref.load %arg1[%c88] : memref<192xf32, #tpu.memory_space<smem>>
    %275 = vector.broadcast %274 : f32 to vector<8x128xf32>
    %276 = arith.mulf %275, %33 : vector<8x128xf32>
    %c89 = arith.constant 89 : index
    %277 = memref.load %arg1[%c89] : memref<192xf32, #tpu.memory_space<smem>>
    %278 = vector.broadcast %277 : f32 to vector<8x128xf32>
    %279 = arith.mulf %278, %57 : vector<8x128xf32>
    %280 = arith.addf %276, %279 : vector<8x128xf32>
    %c90 = arith.constant 90 : index
    %281 = memref.load %arg1[%c90] : memref<192xf32, #tpu.memory_space<smem>>
    %282 = vector.broadcast %281 : f32 to vector<8x128xf32>
    %283 = arith.mulf %282, %81 : vector<8x128xf32>
    %284 = arith.addf %280, %283 : vector<8x128xf32>
    %c91 = arith.constant 91 : index
    %285 = memref.load %arg1[%c91] : memref<192xf32, #tpu.memory_space<smem>>
    %286 = vector.broadcast %285 : f32 to vector<8x128xf32>
    %287 = arith.mulf %286, %105 : vector<8x128xf32>
    %288 = arith.addf %284, %287 : vector<8x128xf32>
    %c92 = arith.constant 92 : index
    %289 = memref.load %arg1[%c92] : memref<192xf32, #tpu.memory_space<smem>>
    %290 = vector.broadcast %289 : f32 to vector<8x128xf32>
    %291 = arith.mulf %290, %129 : vector<8x128xf32>
    %292 = arith.addf %288, %291 : vector<8x128xf32>
    %c93 = arith.constant 93 : index
    %293 = memref.load %arg1[%c93] : memref<192xf32, #tpu.memory_space<smem>>
    %294 = vector.broadcast %293 : f32 to vector<8x128xf32>
    %295 = arith.mulf %294, %153 : vector<8x128xf32>
    %296 = arith.addf %292, %295 : vector<8x128xf32>
    %c94 = arith.constant 94 : index
    %297 = memref.load %arg1[%c94] : memref<192xf32, #tpu.memory_space<smem>>
    %298 = vector.broadcast %297 : f32 to vector<8x128xf32>
    %299 = arith.mulf %298, %177 : vector<8x128xf32>
    %300 = arith.addf %296, %299 : vector<8x128xf32>
    %c11_32 = arith.constant 11 : index
    %301 = memref.load %arg2[%c11_32] : memref<24xf32, #tpu.memory_space<smem>>
    %302 = vector.broadcast %301 : f32 to vector<8x128xf32>
    %303 = arith.addf %300, %302 : vector<8x128xf32>
    %cst_33 = arith.constant 0.000000e+00 : f32
    %304 = vector.broadcast %cst_33 : f32 to vector<8x128xf32>
    %305 = arith.maximumf %303, %304 : vector<8x128xf32>
    %c96 = arith.constant 96 : index
    %306 = memref.load %arg1[%c96] : memref<192xf32, #tpu.memory_space<smem>>
    %307 = vector.broadcast %306 : f32 to vector<8x128xf32>
    %308 = arith.mulf %307, %33 : vector<8x128xf32>
    %c97 = arith.constant 97 : index
    %309 = memref.load %arg1[%c97] : memref<192xf32, #tpu.memory_space<smem>>
    %310 = vector.broadcast %309 : f32 to vector<8x128xf32>
    %311 = arith.mulf %310, %57 : vector<8x128xf32>
    %312 = arith.addf %308, %311 : vector<8x128xf32>
    %c98 = arith.constant 98 : index
    %313 = memref.load %arg1[%c98] : memref<192xf32, #tpu.memory_space<smem>>
    %314 = vector.broadcast %313 : f32 to vector<8x128xf32>
    %315 = arith.mulf %314, %81 : vector<8x128xf32>
    %316 = arith.addf %312, %315 : vector<8x128xf32>
    %c99 = arith.constant 99 : index
    %317 = memref.load %arg1[%c99] : memref<192xf32, #tpu.memory_space<smem>>
    %318 = vector.broadcast %317 : f32 to vector<8x128xf32>
    %319 = arith.mulf %318, %105 : vector<8x128xf32>
    %320 = arith.addf %316, %319 : vector<8x128xf32>
    %c100 = arith.constant 100 : index
    %321 = memref.load %arg1[%c100] : memref<192xf32, #tpu.memory_space<smem>>
    %322 = vector.broadcast %321 : f32 to vector<8x128xf32>
    %323 = arith.mulf %322, %129 : vector<8x128xf32>
    %324 = arith.addf %320, %323 : vector<8x128xf32>
    %c101 = arith.constant 101 : index
    %325 = memref.load %arg1[%c101] : memref<192xf32, #tpu.memory_space<smem>>
    %326 = vector.broadcast %325 : f32 to vector<8x128xf32>
    %327 = arith.mulf %326, %153 : vector<8x128xf32>
    %328 = arith.addf %324, %327 : vector<8x128xf32>
    %c102 = arith.constant 102 : index
    %329 = memref.load %arg1[%c102] : memref<192xf32, #tpu.memory_space<smem>>
    %330 = vector.broadcast %329 : f32 to vector<8x128xf32>
    %331 = arith.mulf %330, %177 : vector<8x128xf32>
    %332 = arith.addf %328, %331 : vector<8x128xf32>
    %c12_34 = arith.constant 12 : index
    %333 = memref.load %arg2[%c12_34] : memref<24xf32, #tpu.memory_space<smem>>
    %334 = vector.broadcast %333 : f32 to vector<8x128xf32>
    %335 = arith.addf %332, %334 : vector<8x128xf32>
    %cst_35 = arith.constant 0.000000e+00 : f32
    %336 = vector.broadcast %cst_35 : f32 to vector<8x128xf32>
    %337 = arith.maximumf %335, %336 : vector<8x128xf32>
    %c104 = arith.constant 104 : index
    %338 = memref.load %arg1[%c104] : memref<192xf32, #tpu.memory_space<smem>>
    %339 = vector.broadcast %338 : f32 to vector<8x128xf32>
    %340 = arith.mulf %339, %33 : vector<8x128xf32>
    %c105 = arith.constant 105 : index
    %341 = memref.load %arg1[%c105] : memref<192xf32, #tpu.memory_space<smem>>
    %342 = vector.broadcast %341 : f32 to vector<8x128xf32>
    %343 = arith.mulf %342, %57 : vector<8x128xf32>
    %344 = arith.addf %340, %343 : vector<8x128xf32>
    %c106 = arith.constant 106 : index
    %345 = memref.load %arg1[%c106] : memref<192xf32, #tpu.memory_space<smem>>
    %346 = vector.broadcast %345 : f32 to vector<8x128xf32>
    %347 = arith.mulf %346, %81 : vector<8x128xf32>
    %348 = arith.addf %344, %347 : vector<8x128xf32>
    %c107 = arith.constant 107 : index
    %349 = memref.load %arg1[%c107] : memref<192xf32, #tpu.memory_space<smem>>
    %350 = vector.broadcast %349 : f32 to vector<8x128xf32>
    %351 = arith.mulf %350, %105 : vector<8x128xf32>
    %352 = arith.addf %348, %351 : vector<8x128xf32>
    %c108 = arith.constant 108 : index
    %353 = memref.load %arg1[%c108] : memref<192xf32, #tpu.memory_space<smem>>
    %354 = vector.broadcast %353 : f32 to vector<8x128xf32>
    %355 = arith.mulf %354, %129 : vector<8x128xf32>
    %356 = arith.addf %352, %355 : vector<8x128xf32>
    %c109 = arith.constant 109 : index
    %357 = memref.load %arg1[%c109] : memref<192xf32, #tpu.memory_space<smem>>
    %358 = vector.broadcast %357 : f32 to vector<8x128xf32>
    %359 = arith.mulf %358, %153 : vector<8x128xf32>
    %360 = arith.addf %356, %359 : vector<8x128xf32>
    %c110 = arith.constant 110 : index
    %361 = memref.load %arg1[%c110] : memref<192xf32, #tpu.memory_space<smem>>
    %362 = vector.broadcast %361 : f32 to vector<8x128xf32>
    %363 = arith.mulf %362, %177 : vector<8x128xf32>
    %364 = arith.addf %360, %363 : vector<8x128xf32>
    %c13 = arith.constant 13 : index
    %365 = memref.load %arg2[%c13] : memref<24xf32, #tpu.memory_space<smem>>
    %366 = vector.broadcast %365 : f32 to vector<8x128xf32>
    %367 = arith.addf %364, %366 : vector<8x128xf32>
    %cst_36 = arith.constant 0.000000e+00 : f32
    %368 = vector.broadcast %cst_36 : f32 to vector<8x128xf32>
    %369 = arith.maximumf %367, %368 : vector<8x128xf32>
    %c112 = arith.constant 112 : index
    %370 = memref.load %arg1[%c112] : memref<192xf32, #tpu.memory_space<smem>>
    %371 = vector.broadcast %370 : f32 to vector<8x128xf32>
    %372 = arith.mulf %371, %33 : vector<8x128xf32>
    %c113 = arith.constant 113 : index
    %373 = memref.load %arg1[%c113] : memref<192xf32, #tpu.memory_space<smem>>
    %374 = vector.broadcast %373 : f32 to vector<8x128xf32>
    %375 = arith.mulf %374, %57 : vector<8x128xf32>
    %376 = arith.addf %372, %375 : vector<8x128xf32>
    %c114 = arith.constant 114 : index
    %377 = memref.load %arg1[%c114] : memref<192xf32, #tpu.memory_space<smem>>
    %378 = vector.broadcast %377 : f32 to vector<8x128xf32>
    %379 = arith.mulf %378, %81 : vector<8x128xf32>
    %380 = arith.addf %376, %379 : vector<8x128xf32>
    %c115 = arith.constant 115 : index
    %381 = memref.load %arg1[%c115] : memref<192xf32, #tpu.memory_space<smem>>
    %382 = vector.broadcast %381 : f32 to vector<8x128xf32>
    %383 = arith.mulf %382, %105 : vector<8x128xf32>
    %384 = arith.addf %380, %383 : vector<8x128xf32>
    %c116 = arith.constant 116 : index
    %385 = memref.load %arg1[%c116] : memref<192xf32, #tpu.memory_space<smem>>
    %386 = vector.broadcast %385 : f32 to vector<8x128xf32>
    %387 = arith.mulf %386, %129 : vector<8x128xf32>
    %388 = arith.addf %384, %387 : vector<8x128xf32>
    %c117 = arith.constant 117 : index
    %389 = memref.load %arg1[%c117] : memref<192xf32, #tpu.memory_space<smem>>
    %390 = vector.broadcast %389 : f32 to vector<8x128xf32>
    %391 = arith.mulf %390, %153 : vector<8x128xf32>
    %392 = arith.addf %388, %391 : vector<8x128xf32>
    %c118 = arith.constant 118 : index
    %393 = memref.load %arg1[%c118] : memref<192xf32, #tpu.memory_space<smem>>
    %394 = vector.broadcast %393 : f32 to vector<8x128xf32>
    %395 = arith.mulf %394, %177 : vector<8x128xf32>
    %396 = arith.addf %392, %395 : vector<8x128xf32>
    %c14 = arith.constant 14 : index
    %397 = memref.load %arg2[%c14] : memref<24xf32, #tpu.memory_space<smem>>
    %398 = vector.broadcast %397 : f32 to vector<8x128xf32>
    %399 = arith.addf %396, %398 : vector<8x128xf32>
    %cst_37 = arith.constant 0.000000e+00 : f32
    %400 = vector.broadcast %cst_37 : f32 to vector<8x128xf32>
    %401 = arith.maximumf %399, %400 : vector<8x128xf32>
    %c128 = arith.constant 128 : index
    %402 = memref.load %arg1[%c128] : memref<192xf32, #tpu.memory_space<smem>>
    %403 = vector.broadcast %402 : f32 to vector<8x128xf32>
    %404 = arith.mulf %403, %209 : vector<8x128xf32>
    %c129 = arith.constant 129 : index
    %405 = memref.load %arg1[%c129] : memref<192xf32, #tpu.memory_space<smem>>
    %406 = vector.broadcast %405 : f32 to vector<8x128xf32>
    %407 = arith.mulf %406, %241 : vector<8x128xf32>
    %408 = arith.addf %404, %407 : vector<8x128xf32>
    %c130 = arith.constant 130 : index
    %409 = memref.load %arg1[%c130] : memref<192xf32, #tpu.memory_space<smem>>
    %410 = vector.broadcast %409 : f32 to vector<8x128xf32>
    %411 = arith.mulf %410, %273 : vector<8x128xf32>
    %412 = arith.addf %408, %411 : vector<8x128xf32>
    %c131 = arith.constant 131 : index
    %413 = memref.load %arg1[%c131] : memref<192xf32, #tpu.memory_space<smem>>
    %414 = vector.broadcast %413 : f32 to vector<8x128xf32>
    %415 = arith.mulf %414, %305 : vector<8x128xf32>
    %416 = arith.addf %412, %415 : vector<8x128xf32>
    %c132 = arith.constant 132 : index
    %417 = memref.load %arg1[%c132] : memref<192xf32, #tpu.memory_space<smem>>
    %418 = vector.broadcast %417 : f32 to vector<8x128xf32>
    %419 = arith.mulf %418, %337 : vector<8x128xf32>
    %420 = arith.addf %416, %419 : vector<8x128xf32>
    %c133 = arith.constant 133 : index
    %421 = memref.load %arg1[%c133] : memref<192xf32, #tpu.memory_space<smem>>
    %422 = vector.broadcast %421 : f32 to vector<8x128xf32>
    %423 = arith.mulf %422, %369 : vector<8x128xf32>
    %424 = arith.addf %420, %423 : vector<8x128xf32>
    %c134 = arith.constant 134 : index
    %425 = memref.load %arg1[%c134] : memref<192xf32, #tpu.memory_space<smem>>
    %426 = vector.broadcast %425 : f32 to vector<8x128xf32>
    %427 = arith.mulf %426, %401 : vector<8x128xf32>
    %428 = arith.addf %424, %427 : vector<8x128xf32>
    %c16_38 = arith.constant 16 : index
    %429 = memref.load %arg2[%c16_38] : memref<24xf32, #tpu.memory_space<smem>>
    %430 = vector.broadcast %429 : f32 to vector<8x128xf32>
    %431 = arith.addf %428, %430 : vector<8x128xf32>
    %c136 = arith.constant 136 : index
    %432 = memref.load %arg1[%c136] : memref<192xf32, #tpu.memory_space<smem>>
    %433 = vector.broadcast %432 : f32 to vector<8x128xf32>
    %434 = arith.mulf %433, %209 : vector<8x128xf32>
    %c137 = arith.constant 137 : index
    %435 = memref.load %arg1[%c137] : memref<192xf32, #tpu.memory_space<smem>>
    %436 = vector.broadcast %435 : f32 to vector<8x128xf32>
    %437 = arith.mulf %436, %241 : vector<8x128xf32>
    %438 = arith.addf %434, %437 : vector<8x128xf32>
    %c138 = arith.constant 138 : index
    %439 = memref.load %arg1[%c138] : memref<192xf32, #tpu.memory_space<smem>>
    %440 = vector.broadcast %439 : f32 to vector<8x128xf32>
    %441 = arith.mulf %440, %273 : vector<8x128xf32>
    %442 = arith.addf %438, %441 : vector<8x128xf32>
    %c139 = arith.constant 139 : index
    %443 = memref.load %arg1[%c139] : memref<192xf32, #tpu.memory_space<smem>>
    %444 = vector.broadcast %443 : f32 to vector<8x128xf32>
    %445 = arith.mulf %444, %305 : vector<8x128xf32>
    %446 = arith.addf %442, %445 : vector<8x128xf32>
    %c140 = arith.constant 140 : index
    %447 = memref.load %arg1[%c140] : memref<192xf32, #tpu.memory_space<smem>>
    %448 = vector.broadcast %447 : f32 to vector<8x128xf32>
    %449 = arith.mulf %448, %337 : vector<8x128xf32>
    %450 = arith.addf %446, %449 : vector<8x128xf32>
    %c141 = arith.constant 141 : index
    %451 = memref.load %arg1[%c141] : memref<192xf32, #tpu.memory_space<smem>>
    %452 = vector.broadcast %451 : f32 to vector<8x128xf32>
    %453 = arith.mulf %452, %369 : vector<8x128xf32>
    %454 = arith.addf %450, %453 : vector<8x128xf32>
    %c142 = arith.constant 142 : index
    %455 = memref.load %arg1[%c142] : memref<192xf32, #tpu.memory_space<smem>>
    %456 = vector.broadcast %455 : f32 to vector<8x128xf32>
    %457 = arith.mulf %456, %401 : vector<8x128xf32>
    %458 = arith.addf %454, %457 : vector<8x128xf32>
    %c17_39 = arith.constant 17 : index
    %459 = memref.load %arg2[%c17_39] : memref<24xf32, #tpu.memory_space<smem>>
    %460 = vector.broadcast %459 : f32 to vector<8x128xf32>
    %461 = arith.addf %458, %460 : vector<8x128xf32>
    %c144 = arith.constant 144 : index
    %462 = memref.load %arg1[%c144] : memref<192xf32, #tpu.memory_space<smem>>
    %463 = vector.broadcast %462 : f32 to vector<8x128xf32>
    %464 = arith.mulf %463, %209 : vector<8x128xf32>
    %c145 = arith.constant 145 : index
    %465 = memref.load %arg1[%c145] : memref<192xf32, #tpu.memory_space<smem>>
    %466 = vector.broadcast %465 : f32 to vector<8x128xf32>
    %467 = arith.mulf %466, %241 : vector<8x128xf32>
    %468 = arith.addf %464, %467 : vector<8x128xf32>
    %c146 = arith.constant 146 : index
    %469 = memref.load %arg1[%c146] : memref<192xf32, #tpu.memory_space<smem>>
    %470 = vector.broadcast %469 : f32 to vector<8x128xf32>
    %471 = arith.mulf %470, %273 : vector<8x128xf32>
    %472 = arith.addf %468, %471 : vector<8x128xf32>
    %c147 = arith.constant 147 : index
    %473 = memref.load %arg1[%c147] : memref<192xf32, #tpu.memory_space<smem>>
    %474 = vector.broadcast %473 : f32 to vector<8x128xf32>
    %475 = arith.mulf %474, %305 : vector<8x128xf32>
    %476 = arith.addf %472, %475 : vector<8x128xf32>
    %c148 = arith.constant 148 : index
    %477 = memref.load %arg1[%c148] : memref<192xf32, #tpu.memory_space<smem>>
    %478 = vector.broadcast %477 : f32 to vector<8x128xf32>
    %479 = arith.mulf %478, %337 : vector<8x128xf32>
    %480 = arith.addf %476, %479 : vector<8x128xf32>
    %c149 = arith.constant 149 : index
    %481 = memref.load %arg1[%c149] : memref<192xf32, #tpu.memory_space<smem>>
    %482 = vector.broadcast %481 : f32 to vector<8x128xf32>
    %483 = arith.mulf %482, %369 : vector<8x128xf32>
    %484 = arith.addf %480, %483 : vector<8x128xf32>
    %c150 = arith.constant 150 : index
    %485 = memref.load %arg1[%c150] : memref<192xf32, #tpu.memory_space<smem>>
    %486 = vector.broadcast %485 : f32 to vector<8x128xf32>
    %487 = arith.mulf %486, %401 : vector<8x128xf32>
    %488 = arith.addf %484, %487 : vector<8x128xf32>
    %c18_40 = arith.constant 18 : index
    %489 = memref.load %arg2[%c18_40] : memref<24xf32, #tpu.memory_space<smem>>
    %490 = vector.broadcast %489 : f32 to vector<8x128xf32>
    %491 = arith.addf %488, %490 : vector<8x128xf32>
    %c152 = arith.constant 152 : index
    %492 = memref.load %arg1[%c152] : memref<192xf32, #tpu.memory_space<smem>>
    %493 = vector.broadcast %492 : f32 to vector<8x128xf32>
    %494 = arith.mulf %493, %209 : vector<8x128xf32>
    %c153 = arith.constant 153 : index
    %495 = memref.load %arg1[%c153] : memref<192xf32, #tpu.memory_space<smem>>
    %496 = vector.broadcast %495 : f32 to vector<8x128xf32>
    %497 = arith.mulf %496, %241 : vector<8x128xf32>
    %498 = arith.addf %494, %497 : vector<8x128xf32>
    %c154 = arith.constant 154 : index
    %499 = memref.load %arg1[%c154] : memref<192xf32, #tpu.memory_space<smem>>
    %500 = vector.broadcast %499 : f32 to vector<8x128xf32>
    %501 = arith.mulf %500, %273 : vector<8x128xf32>
    %502 = arith.addf %498, %501 : vector<8x128xf32>
    %c155 = arith.constant 155 : index
    %503 = memref.load %arg1[%c155] : memref<192xf32, #tpu.memory_space<smem>>
    %504 = vector.broadcast %503 : f32 to vector<8x128xf32>
    %505 = arith.mulf %504, %305 : vector<8x128xf32>
    %506 = arith.addf %502, %505 : vector<8x128xf32>
    %c156 = arith.constant 156 : index
    %507 = memref.load %arg1[%c156] : memref<192xf32, #tpu.memory_space<smem>>
    %508 = vector.broadcast %507 : f32 to vector<8x128xf32>
    %509 = arith.mulf %508, %337 : vector<8x128xf32>
    %510 = arith.addf %506, %509 : vector<8x128xf32>
    %c157 = arith.constant 157 : index
    %511 = memref.load %arg1[%c157] : memref<192xf32, #tpu.memory_space<smem>>
    %512 = vector.broadcast %511 : f32 to vector<8x128xf32>
    %513 = arith.mulf %512, %369 : vector<8x128xf32>
    %514 = arith.addf %510, %513 : vector<8x128xf32>
    %c158 = arith.constant 158 : index
    %515 = memref.load %arg1[%c158] : memref<192xf32, #tpu.memory_space<smem>>
    %516 = vector.broadcast %515 : f32 to vector<8x128xf32>
    %517 = arith.mulf %516, %401 : vector<8x128xf32>
    %518 = arith.addf %514, %517 : vector<8x128xf32>
    %c19_41 = arith.constant 19 : index
    %519 = memref.load %arg2[%c19_41] : memref<24xf32, #tpu.memory_space<smem>>
    %520 = vector.broadcast %519 : f32 to vector<8x128xf32>
    %521 = arith.addf %518, %520 : vector<8x128xf32>
    %c0_42 = arith.constant 0 : index
    %c0_43 = arith.constant 0 : index
    %c0_44 = arith.constant 0 : index
    %522 = vector.load %arg4[%c0_42, %c0_43, %c0_44] : memref<4x8x128xf32, #tpu.memory_space<vmem>>, vector<1x8x128xf32>
    %523 = vector.shape_cast %522 : vector<1x8x128xf32> to vector<8x128xf32>
    %524 = vector.shape_cast %431 : vector<8x128xf32> to vector<1x8x128xf32>
    tpu.vector_store %arg4[%c0_42, %c0_43, %c0_44], %524 {strides = array<i32>} : memref<4x8x128xf32, #tpu.memory_space<vmem>>, vector<1x8x128xf32>,
    %c1_45 = arith.constant 1 : index
    %c0_46 = arith.constant 0 : index
    %c0_47 = arith.constant 0 : index
    %525 = vector.load %arg4[%c1_45, %c0_46, %c0_47] : memref<4x8x128xf32, #tpu.memory_space<vmem>>, vector<1x8x128xf32>
    %526 = vector.shape_cast %525 : vector<1x8x128xf32> to vector<8x128xf32>
    %527 = vector.shape_cast %461 : vector<8x128xf32> to vector<1x8x128xf32>
    tpu.vector_store %arg4[%c1_45, %c0_46, %c0_47], %527 {strides = array<i32>} : memref<4x8x128xf32, #tpu.memory_space<vmem>>, vector<1x8x128xf32>,
    %c2_48 = arith.constant 2 : index
    %c0_49 = arith.constant 0 : index
    %c0_50 = arith.constant 0 : index
    %528 = vector.load %arg4[%c2_48, %c0_49, %c0_50] : memref<4x8x128xf32, #tpu.memory_space<vmem>>, vector<1x8x128xf32>
    %529 = vector.shape_cast %528 : vector<1x8x128xf32> to vector<8x128xf32>
    %530 = vector.shape_cast %491 : vector<8x128xf32> to vector<1x8x128xf32>
    tpu.vector_store %arg4[%c2_48, %c0_49, %c0_50], %530 {strides = array<i32>} : memref<4x8x128xf32, #tpu.memory_space<vmem>>, vector<1x8x128xf32>,
    %c3_51 = arith.constant 3 : index
    %c0_52 = arith.constant 0 : index
    %c0_53 = arith.constant 0 : index
    %531 = vector.load %arg4[%c3_51, %c0_52, %c0_53] : memref<4x8x128xf32, #tpu.memory_space<vmem>>, vector<1x8x128xf32>
    %532 = vector.shape_cast %531 : vector<1x8x128xf32> to vector<8x128xf32>
    %533 = vector.shape_cast %521 : vector<8x128xf32> to vector<1x8x128xf32>
    tpu.vector_store %arg4[%c3_51, %c0_52, %c0_53], %533 {strides = array<i32>} : memref<4x8x128xf32, #tpu.memory_space<vmem>>, vector<1x8x128xf32>,
    return
  }
  func.func @transform_0(%arg0: i32) -> i32 {
    %c0_i32 = arith.constant 0 : i32
    %c0_i32_0 = arith.constant 0 : i32
    return %c0_i32 : i32
  }
  func.func @transform_1(%arg0: i32) -> i32 {
    %c0_i32 = arith.constant 0 : i32
    %c0_i32_0 = arith.constant 0 : i32
    return %c0_i32 : i32
  }
  func.func @transform_2(%arg0: i32) -> (i32, i32, i32) {
    %c0_i32 = arith.constant 0 : i32
    %c0_i32_0 = arith.constant 0 : i32
    %c0_i32_1 = arith.constant 0 : i32
    return %c0_i32, %arg0, %c0_i32_0 : i32, i32, i32
  }
  func.func @transform_3(%arg0: i32) -> (i32, i32, i32) {
    %c0_i32 = arith.constant 0 : i32
    %c0_i32_0 = arith.constant 0 : i32
    %c0_i32_1 = arith.constant 0 : i32
    return %c0_i32, %arg0, %c0_i32_0 : i32, i32, i32
  }
}

</mosaic_0001>

<llo_original>
// kernel: net_forward_packed.1
$region0: #{net_forward_packed.1}
  #allocation0 [shape = 'u32[]', space=smem, size = 0x4, offset = 0x4, fixed_abs, tag = 'smem constant byte address 0x4 - core index']
  #allocation1 [shape = 'u32[144,128]{1,0:T(1,128)}', space=vmem, size = 0x12000, scoped, tag = 'internal scratch']
  %s0 = inlined_call_operand.vmem [shape: f32[192], index: 0, kind: input, shape index: {}]
  %s1 = inlined_call_operand.vmem [shape: f32[24], index: 1, kind: input, shape index: {}]
  %s2 = inlined_call_operand.vmem [shape: f32[5,8,128], index: 2, kind: input, shape index: {}]
  %s3 = inlined_call_operand.vmem [shape: f32[4,8,128], index: 3, kind: output, shape index: {}]
  %s4 = sld [smem:[#allocation0]]
  $region30: #{net_forward_packed.1} parent=0
    _
  %s6 = ssub.s32 1, %s4
  %s7 = scalar_select 0, %s6, %s4
  $region1: #{net_forward_packed.1} parent=0
    #allocation2 [shape = 'u8[1024]{0}', space=smem, size = 0x400, scoped, tag = 'input window, operand 0, single buffered']
    #allocation3 [shape = 's32[1]{0}', space=sflag, size = 0x4, scoped, tag = 'scoped memory for net_forward_packed.1']
    #allocation4 [shape = 'u8[512]{0}', space=smem, size = 0x200, scoped, tag = 'input window, operand 1, single buffered']
    #allocation5 [shape = 's32[1]{0}', space=sflag, size = 0x4, scoped, tag = 'scoped memory for net_forward_packed.1']
    %8 = vsyncpa [#allocation3], 0
    %9 = vsyncpa [#allocation5], 0
    // Predicated region
    $region2: #{net_forward_packed.1} parent=1 // pred_check
      _
    $region3: #{net_forward_packed.1} parent=1 // pred_check_branch
      %11 = sbr.rel (0) target = $region5
    $region4: #{net_forward_packed.1} parent=1 // pred_region
      %s13 = ssub.s32 32, 32
      %14 = vsyncadd [#allocation3], %s13
      %s16 = sshll.u32 %s0, 4
      %s17 = int_to_ptr.vmem [resolvable:$true] %s16
      %19 = dma.vmem_to_smem %s17, 32, [#allocation2], [#allocation3]
    $region5: #{net_forward_packed.1} parent=1 // pred_fallthru
      _
    // Predicated region
    $region6: #{net_forward_packed.1} parent=1 // pred_check
      _
    $region7: #{net_forward_packed.1} parent=1 // pred_check_branch
      %21 = sbr.rel (0) target = $region9
    $region8: #{net_forward_packed.1} parent=1 // pred_region
      %s23 = ssub.s32 16, 16
      %24 = vsyncadd [#allocation5], %s23
      %s26 = sshll.u32 %s1, 4
      %s27 = int_to_ptr.vmem [resolvable:$true] %s26
      %29 = dma.vmem_to_smem %s27, 16, [#allocation4], [#allocation5]
    $region9: #{net_forward_packed.1} parent=1 // pred_fallthru
      _
    // Predicated region
    $region10: #{net_forward_packed.1} parent=1 // pred_check
      _
    $region11: #{net_forward_packed.1} parent=1 // pred_check_branch
      %31 = sbr.rel (0) target = $region13
    $region12: #{net_forward_packed.1} parent=1 // pred_region
      _
    $region13: #{net_forward_packed.1} parent=1 // pred_fallthru
      _
    // Predicated region
    $region14: #{net_forward_packed.1} parent=1 // pred_check
      _
    $region15: #{net_forward_packed.1} parent=1 // pred_check_branch
      %33 = sbr.rel (0) target = $region17
    $region16: #{net_forward_packed.1} parent=1 // pred_region
      %34 = dma.done [#allocation3], 32
    $region17: #{net_forward_packed.1} parent=1 // pred_fallthru
      _
    // Predicated region
    $region18: #{net_forward_packed.1} parent=1 // pred_check
      _
    $region19: #{net_forward_packed.1} parent=1 // pred_check_branch
      %36 = sbr.rel (0) target = $region21
    $region20: #{net_forward_packed.1} parent=1 // pred_region
      %37 = dma.done [#allocation5], 16
    $region21: #{net_forward_packed.1} parent=1 // pred_fallthru
      _
    %38 = sfence
    %v39 = vld [vmem:[%s2] sm:$0xff]
    %s40 = scalar_lea.vmem %s2, 8
    %v41 = vld [vmem:[%s40] sm:$0xff]
    %s42 = scalar_lea.vmem %s2, 16
    %v43 = vld [vmem:[%s42] sm:$0xff]
    %s44 = scalar_lea.vmem %s2, 24
    %v45 = vld [vmem:[%s44] sm:$0xff]
    %s46 = scalar_lea.vmem %s2, 32
    %v47 = vld [vmem:[%s46] sm:$0xff]
    %s48 = sld [smem:[#allocation2]]
    %v49 = vstv %s48
    %v50 = vmul.f32 %v49, %v39
    %s51 = sld [smem:[#allocation2 + $0x1]]
    %v52 = vstv %s51
    %v53 = vmul.f32 %v52, %v41
    %v54 = vadd.f32 %v50, %v53
    %s55 = sld [smem:[#allocation2 + $0x2]]
    %v56 = vstv %s55
    %v57 = vmul.f32 %v56, %v43
    %v58 = vadd.f32 %v54, %v57
    %s59 = sld [smem:[#allocation2 + $0x3]]
    %v60 = vstv %s59
    %v61 = vmul.f32 %v60, %v45
    %v62 = vadd.f32 %v58, %v61
    %s63 = sld [smem:[#allocation2 + $0x4]]
    %v64 = vstv %s63
    %v65 = vmul.f32 %v64, %v47
    %v66 = vadd.f32 %v62, %v65
    %s67 = sld [smem:[#allocation4]]
    %v68 = vstv %s67
    %v69 = vadd.f32 %v66, %v68
    %v70 = vmax.f32 %v69, 0.0
    %s71 = sld [smem:[#allocation2 + $0x8]]
    %v72 = vstv %s71
    %v73 = vmul.f32 %v72, %v39
    %s74 = sld [smem:[#allocation2 + $0x9]]
    %v75 = vstv %s74
    %v76 = vmul.f32 %v75, %v41
    %v77 = vadd.f32 %v73, %v76
    %s78 = sld [smem:[#allocation2 + $0xa]]
    %v79 = vstv %s78
    %v80 = vmul.f32 %v79, %v43
    %v81 = vadd.f32 %v77, %v80
    %s82 = sld [smem:[#allocation2 + $0xb]]
    %v83 = vstv %s82
    %v84 = vmul.f32 %v83, %v45
    %v85 = vadd.f32 %v81, %v84
    %s86 = sld [smem:[#allocation2 + $0xc]]
    %v87 = vstv %s86
    %v88 = vmul.f32 %v87, %v47
    %v89 = vadd.f32 %v85, %v88
    %s90 = sld [smem:[#allocation4 + $0x1]]
    %v91 = vstv %s90
    %v92 = vadd.f32 %v89, %v91
    %v93 = vmax.f32 %v92, 0.0
    %s94 = sld [smem:[#allocation2 + $0x10]]
    %v95 = vstv %s94
    %v96 = vmul.f32 %v95, %v39
    %s97 = sld [smem:[#allocation2 + $0x11]]
    %v98 = vstv %s97
    %v99 = vmul.f32 %v98, %v41
    %v100 = vadd.f32 %v96, %v99
    %s101 = sld [smem:[#allocation2 + $0x12]]
    %v102 = vstv %s101
    %v103 = vmul.f32 %v102, %v43
    %v104 = vadd.f32 %v100, %v103
    %s105 = sld [smem:[#allocation2 + $0x13]]
    %v106 = vstv %s105
    %v107 = vmul.f32 %v106, %v45
    %v108 = vadd.f32 %v104, %v107
    %s109 = sld [smem:[#allocation2 + $0x14]]
    %v110 = vstv %s109
    %v111 = vmul.f32 %v110, %v47
    %v112 = vadd.f32 %v108, %v111
    %s113 = sld [smem:[#allocation4 + $0x2]]
    %v114 = vstv %s113
    %v115 = vadd.f32 %v112, %v114
    %v116 = vmax.f32 %v115, 0.0
    %s117 = sld [smem:[#allocation2 + $0x18]]
    %v118 = vstv %s117
    %v119 = vmul.f32 %v118, %v39
    %s120 = sld [smem:[#allocation2 + $0x19]]
    %v121 = vstv %s120
    %v122 = vmul.f32 %v121, %v41
    %v123 = vadd.f32 %v119, %v122
    %s124 = sld [smem:[#allocation2 + $0x1a]]
    %v125 = vstv %s124
    %v126 = vmul.f32 %v125, %v43
    %v127 = vadd.f32 %v123, %v126
    %s128 = sld [smem:[#allocation2 + $0x1b]]
    %v129 = vstv %s128
    %v130 = vmul.f32 %v129, %v45
    %v131 = vadd.f32 %v127, %v130
    %s132 = sld [smem:[#allocation2 + $0x1c]]
    %v133 = vstv %s132
    %v134 = vmul.f32 %v133, %v47
    %v135 = vadd.f32 %v131, %v134
    %s136 = sld [smem:[#allocation4 + $0x3]]
    %v137 = vstv %s136
    %v138 = vadd.f32 %v135, %v137
    %v139 = vmax.f32 %v138, 0.0
    %s140 = sld [smem:[#allocation2 + $0x20]]
    %v141 = vstv %s140
    %v142 = vmul.f32 %v141, %v39
    %s143 = sld [smem:[#allocation2 + $0x21]]
    %v144 = vstv %s143
    %v145 = vmul.f32 %v144, %v41
    %v146 = vadd.f32 %v142, %v145
    %s147 = sld [smem:[#allocation2 + $0x22]]
    %v148 = vstv %s147
    %v149 = vmul.f32 %v148, %v43
    %v150 = vadd.f32 %v146, %v149
    %s151 = sld [smem:[#allocation2 + $0x23]]
    %v152 = vstv %s151
    %v153 = vmul.f32 %v152, %v45
    %v154 = vadd.f32 %v150, %v153
    %s155 = sld [smem:[#allocation2 + $0x24]]
    %v156 = vstv %s155
    %v157 = vmul.f32 %v156, %v47
    %v158 = vadd.f32 %v154, %v157
    %s159 = sld [smem:[#allocation4 + $0x4]]
    %v160 = vstv %s159
    %v161 = vadd.f32 %v158, %v160
    %v162 = vmax.f32 %v161, 0.0
    %s163 = sld [smem:[#allocation2 + $0x28]]
    %v164 = vstv %s163
    %v165 = vmul.f32 %v164, %v39
    %s166 = sld [smem:[#allocation2 + $0x29]]
    %v167 = vstv %s166
    %v168 = vmul.f32 %v167, %v41
    %v169 = vadd.f32 %v165, %v168
    %s170 = sld [smem:[#allocation2 + $0x2a]]
    %v171 = vstv %s170
    %v172 = vmul.f32 %v171, %v43
    %v173 = vadd.f32 %v169, %v172
    %s174 = sld [smem:[#allocation2 + $0x2b]]
    %v175 = vstv %s174
    %v176 = vmul.f32 %v175, %v45
    %v177 = vadd.f32 %v173, %v176
    %s178 = sld [smem:[#allocation2 + $0x2c]]
    %v179 = vstv %s178
    %v180 = vmul.f32 %v179, %v47
    %v181 = vadd.f32 %v177, %v180
    %s182 = sld [smem:[#allocation4 + $0x5]]
    %v183 = vstv %s182
    %v184 = vadd.f32 %v181, %v183
    %v185 = vmax.f32 %v184, 0.0
    %s186 = sld [smem:[#allocation2 + $0x30]]
    %v187 = vstv %s186
    %v188 = vmul.f32 %v187, %v39
    %s189 = sld [smem:[#allocation2 + $0x31]]
    %v190 = vstv %s189
    %v191 = vmul.f32 %v190, %v41
    %v192 = vadd.f32 %v188, %v191
    %s193 = sld [smem:[#allocation2 + $0x32]]
    %v194 = vstv %s193
    %v195 = vmul.f32 %v194, %v43
    %v196 = vadd.f32 %v192, %v195
    %s197 = sld [smem:[#allocation2 + $0x33]]
    %v198 = vstv %s197
    %v199 = vmul.f32 %v198, %v45
    %v200 = vadd.f32 %v196, %v199
    %s201 = sld [smem:[#allocation2 + $0x34]]
    %v202 = vstv %s201
    %v203 = vmul.f32 %v202, %v47
    %v204 = vadd.f32 %v200, %v203
    %s205 = sld [smem:[#allocation4 + $0x6]]
    %v206 = vstv %s205
    %v207 = vadd.f32 %v204, %v206
    %v208 = vmax.f32 %v207, 0.0
    %s209 = sld [smem:[#allocation2 + $0x40]]
    %v210 = vstv %s209
    %v211 = vmul.f32 %v210, %v70
    %s212 = sld [smem:[#allocation2 + $0x41]]
    %v213 = vstv %s212
    %v214 = vmul.f32 %v213, %v93
    %v215 = vadd.f32 %v211, %v214
    %s216 = sld [smem:[#allocation2 + $0x42]]
    %v217 = vstv %s216
    %v218 = vmul.f32 %v217, %v116
    %v219 = vadd.f32 %v215, %v218
    %s220 = sld [smem:[#allocation2 + $0x43]]
    %v221 = vstv %s220
    %v222 = vmul.f32 %v221, %v139
    %v223 = vadd.f32 %v219, %v222
    %s224 = sld [smem:[#allocation2 + $0x44]]
    %v225 = vstv %s224
    %v226 = vmul.f32 %v225, %v162
    %v227 = vadd.f32 %v223, %v226
    %s228 = sld [smem:[#allocation2 + $0x45]]
    %v229 = vstv %s228
    %v230 = vmul.f32 %v229, %v185
    %v231 = vadd.f32 %v227, %v230
    %s232 = sld [smem:[#allocation2 + $0x46]]
    %v233 = vstv %s232
    %v234 = vmul.f32 %v233, %v208
    %v235 = vadd.f32 %v231, %v234
    %s236 = sld [smem:[#allocation4 + $0x8]]
    %v237 = vstv %s236
    %v238 = vadd.f32 %v235, %v237
    %v239 = vmax.f32 %v238, 0.0
    %s240 = sld [smem:[#allocation2 + $0x48]]
    %v241 = vstv %s240
    %v242 = vmul.f32 %v241, %v70
    %s243 = sld [smem:[#allocation2 + $0x49]]
    %v244 = vstv %s243
    %v245 = vmul.f32 %v244, %v93
    %v246 = vadd.f32 %v242, %v245
    %s247 = sld [smem:[#allocation2 + $0x4a]]
    %v248 = vstv %s247
    %v249 = vmul.f32 %v248, %v116
    %v250 = vadd.f32 %v246, %v249
    %s251 = sld [smem:[#allocation2 + $0x4b]]
    %v252 = vstv %s251
    %v253 = vmul.f32 %v252, %v139
    %v254 = vadd.f32 %v250, %v253
    %s255 = sld [smem:[#allocation2 + $0x4c]]
    %v256 = vstv %s255
    %v257 = vmul.f32 %v256, %v162
    %v258 = vadd.f32 %v254, %v257
    %s259 = sld [smem:[#allocation2 + $0x4d]]
    %v260 = vstv %s259
    %v261 = vmul.f32 %v260, %v185
    %v262 = vadd.f32 %v258, %v261
    %s263 = sld [smem:[#allocation2 + $0x4e]]
    %v264 = vstv %s263
    %v265 = vmul.f32 %v264, %v208
    %v266 = vadd.f32 %v262, %v265
    %s267 = sld [smem:[#allocation4 + $0x9]]
    %v268 = vstv %s267
    %v269 = vadd.f32 %v266, %v268
    %v270 = vmax.f32 %v269, 0.0
    %s271 = sld [smem:[#allocation2 + $0x50]]
    %v272 = vstv %s271
    %v273 = vmul.f32 %v272, %v70
    %s274 = sld [smem:[#allocation2 + $0x51]]
    %v275 = vstv %s274
    %v276 = vmul.f32 %v275, %v93
    %v277 = vadd.f32 %v273, %v276
    %s278 = sld [smem:[#allocation2 + $0x52]]
    %v279 = vstv %s278
    %v280 = vmul.f32 %v279, %v116
    %v281 = vadd.f32 %v277, %v280
    %s282 = sld [smem:[#allocation2 + $0x53]]
    %v283 = vstv %s282
    %v284 = vmul.f32 %v283, %v139
    %v285 = vadd.f32 %v281, %v284
    %s286 = sld [smem:[#allocation2 + $0x54]]
    %v287 = vstv %s286
    %v288 = vmul.f32 %v287, %v162
    %v289 = vadd.f32 %v285, %v288
    %s290 = sld [smem:[#allocation2 + $0x55]]
    %v291 = vstv %s290
    %v292 = vmul.f32 %v291, %v185
    %v293 = vadd.f32 %v289, %v292
    %s294 = sld [smem:[#allocation2 + $0x56]]
    %v295 = vstv %s294
    %v296 = vmul.f32 %v295, %v208
    %v297 = vadd.f32 %v293, %v296
    %s298 = sld [smem:[#allocation4 + $0xa]]
    %v299 = vstv %s298
    %v300 = vadd.f32 %v297, %v299
    %v301 = vmax.f32 %v300, 0.0
    %s302 = sld [smem:[#allocation2 + $0x58]]
    %v303 = vstv %s302
    %v304 = vmul.f32 %v303, %v70
    %s305 = sld [smem:[#allocation2 + $0x59]]
    %v306 = vstv %s305
    %v307 = vmul.f32 %v306, %v93
    %v308 = vadd.f32 %v304, %v307
    %s309 = sld [smem:[#allocation2 + $0x5a]]
    %v310 = vstv %s309
    %v311 = vmul.f32 %v310, %v116
    %v312 = vadd.f32 %v308, %v311
    %s313 = sld [smem:[#allocation2 + $0x5b]]
    %v314 = vstv %s313
    %v315 = vmul.f32 %v314, %v139
    %v316 = vadd.f32 %v312, %v315
    %s317 = sld [smem:[#allocation2 + $0x5c]]
    %v318 = vstv %s317
    %v319 = vmul.f32 %v318, %v162
    %v320 = vadd.f32 %v316, %v319
    %s321 = sld [smem:[#allocation2 + $0x5d]]
    %v322 = vstv %s321
    %v323 = vmul.f32 %v322, %v185
    %v324 = vadd.f32 %v320, %v323
    %s325 = sld [smem:[#allocation2 + $0x5e]]
    %v326 = vstv %s325
    %v327 = vmul.f32 %v326, %v208
    %v328 = vadd.f32 %v324, %v327
    %s329 = sld [smem:[#allocation4 + $0xb]]
    %v330 = vstv %s329
    %v331 = vadd.f32 %v328, %v330
    %v332 = vmax.f32 %v331, 0.0
    %s333 = sld [smem:[#allocation2 + $0x60]]
    %v334 = vstv %s333
    %v335 = vmul.f32 %v334, %v70
    %s336 = sld [smem:[#allocation2 + $0x61]]
    %v337 = vstv %s336
    %v338 = vmul.f32 %v337, %v93
    %v339 = vadd.f32 %v335, %v338
    %s340 = sld [smem:[#allocation2 + $0x62]]
    %v341 = vstv %s340
    %v342 = vmul.f32 %v341, %v116
    %v343 = vadd.f32 %v339, %v342
    %s344 = sld [smem:[#allocation2 + $0x63]]
    %v345 = vstv %s344
    %v346 = vmul.f32 %v345, %v139
    %v347 = vadd.f32 %v343, %v346
    %s348 = sld [smem:[#allocation2 + $0x64]]
    %v349 = vstv %s348
    %v350 = vmul.f32 %v349, %v162
    %v351 = vadd.f32 %v347, %v350
    %s352 = sld [smem:[#allocation2 + $0x65]]
    %v353 = vstv %s352
    %v354 = vmul.f32 %v353, %v185
    %v355 = vadd.f32 %v351, %v354
    %s356 = sld [smem:[#allocation2 + $0x66]]
    %v357 = vstv %s356
    %v358 = vmul.f32 %v357, %v208
    %v359 = vadd.f32 %v355, %v358
    %s360 = sld [smem:[#allocation4 + $0xc]]
    %v361 = vstv %s360
    %v362 = vadd.f32 %v359, %v361
    %v363 = vmax.f32 %v362, 0.0
    %s364 = sld [smem:[#allocation2 + $0x68]]
    %v365 = vstv %s364
    %v366 = vmul.f32 %v365, %v70
    %s367 = sld [smem:[#allocation2 + $0x69]]
    %v368 = vstv %s367
    %v369 = vmul.f32 %v368, %v93
    %v370 = vadd.f32 %v366, %v369
    %s371 = sld [smem:[#allocation2 + $0x6a]]
    %v372 = vstv %s371
    %v373 = vmul.f32 %v372, %v116
    %v374 = vadd.f32 %v370, %v373
    %s375 = sld [smem:[#allocation2 + $0x6b]]
    %v376 = vstv %s375
    %v377 = vmul.f32 %v376, %v139
    %v378 = vadd.f32 %v374, %v377
    %s379 = sld [smem:[#allocation2 + $0x6c]]
    %v380 = vstv %s379
    %v381 = vmul.f32 %v380, %v162
    %v382 = vadd.f32 %v378, %v381
    %s383 = sld [smem:[#allocation2 + $0x6d]]
    %v384 = vstv %s383
    %v385 = vmul.f32 %v384, %v185
    %v386 = vadd.f32 %v382, %v385
    %s387 = sld [smem:[#allocation2 + $0x6e]]
    %v388 = vstv %s387
    %v389 = vmul.f32 %v388, %v208
    %v390 = vadd.f32 %v386, %v389
    %s391 = sld [smem:[#allocation4 + $0xd]]
    %v392 = vstv %s391
    %v393 = vadd.f32 %v390, %v392
    %v394 = vmax.f32 %v393, 0.0
    %s395 = sld [smem:[#allocation2 + $0x70]]
    %v396 = vstv %s395
    %v397 = vmul.f32 %v396, %v70
    %s398 = sld [smem:[#allocation2 + $0x71]]
    %v399 = vstv %s398
    %v400 = vmul.f32 %v399, %v93
    %v401 = vadd.f32 %v397, %v400
    %s402 = sld [smem:[#allocation2 + $0x72]]
    %v403 = vstv %s402
    %v404 = vmul.f32 %v403, %v116
    %v405 = vadd.f32 %v401, %v404
    %s406 = sld [smem:[#allocation2 + $0x73]]
    %v407 = vstv %s406
    %v408 = vmul.f32 %v407, %v139
    %v409 = vadd.f32 %v405, %v408
    %s410 = sld [smem:[#allocation2 + $0x74]]
    %v411 = vstv %s410
    %v412 = vmul.f32 %v411, %v162
    %v413 = vadd.f32 %v409, %v412
    %s414 = sld [smem:[#allocation2 + $0x75]]
    %v415 = vstv %s414
    %v416 = vmul.f32 %v415, %v185
    %v417 = vadd.f32 %v413, %v416
    %s418 = sld [smem:[#allocation2 + $0x76]]
    %v419 = vstv %s418
    %v420 = vmul.f32 %v419, %v208
    %v421 = vadd.f32 %v417, %v420
    %s422 = sld [smem:[#allocation4 + $0xe]]
    %v423 = vstv %s422
    %v424 = vadd.f32 %v421, %v423
    %v425 = vmax.f32 %v424, 0.0
    %s426 = sld [smem:[#allocation2 + $0x80]]
    %v427 = vstv %s426
    %v428 = vmul.f32 %v427, %v239
    %s429 = sld [smem:[#allocation2 + $0x81]]
    %v430 = vstv %s429
    %v431 = vmul.f32 %v430, %v270
    %v432 = vadd.f32 %v428, %v431
    %s433 = sld [smem:[#allocation2 + $0x82]]
    %v434 = vstv %s433
    %v435 = vmul.f32 %v434, %v301
    %v436 = vadd.f32 %v432, %v435
    %s437 = sld [smem:[#allocation2 + $0x83]]
    %v438 = vstv %s437
    %v439 = vmul.f32 %v438, %v332
    %v440 = vadd.f32 %v436, %v439
    %s441 = sld [smem:[#allocation2 + $0x84]]
    %v442 = vstv %s441
    %v443 = vmul.f32 %v442, %v363
    %v444 = vadd.f32 %v440, %v443
    %s445 = sld [smem:[#allocation2 + $0x85]]
    %v446 = vstv %s445
    %v447 = vmul.f32 %v446, %v394
    %v448 = vadd.f32 %v444, %v447
    %s449 = sld [smem:[#allocation2 + $0x86]]
    %v450 = vstv %s449
    %v451 = vmul.f32 %v450, %v425
    %v452 = vadd.f32 %v448, %v451
    %s453 = sld [smem:[#allocation4 + $0x10]]
    %v454 = vstv %s453
    %v455 = vadd.f32 %v452, %v454
    %s456 = sld [smem:[#allocation2 + $0x88]]
    %v457 = vstv %s456
    %v458 = vmul.f32 %v457, %v239
    %s459 = sld [smem:[#allocation2 + $0x89]]
    %v460 = vstv %s459
    %v461 = vmul.f32 %v460, %v270
    %v462 = vadd.f32 %v458, %v461
    %s463 = sld [smem:[#allocation2 + $0x8a]]
    %v464 = vstv %s463
    %v465 = vmul.f32 %v464, %v301
    %v466 = vadd.f32 %v462, %v465
    %s467 = sld [smem:[#allocation2 + $0x8b]]
    %v468 = vstv %s467
    %v469 = vmul.f32 %v468, %v332
    %v470 = vadd.f32 %v466, %v469
    %s471 = sld [smem:[#allocation2 + $0x8c]]
    %v472 = vstv %s471
    %v473 = vmul.f32 %v472, %v363
    %v474 = vadd.f32 %v470, %v473
    %s475 = sld [smem:[#allocation2 + $0x8d]]
    %v476 = vstv %s475
    %v477 = vmul.f32 %v476, %v394
    %v478 = vadd.f32 %v474, %v477
    %s479 = sld [smem:[#allocation2 + $0x8e]]
    %v480 = vstv %s479
    %v481 = vmul.f32 %v480, %v425
    %v482 = vadd.f32 %v478, %v481
    %s483 = sld [smem:[#allocation4 + $0x11]]
    %v484 = vstv %s483
    %v485 = vadd.f32 %v482, %v484
    %s486 = sld [smem:[#allocation2 + $0x90]]
    %v487 = vstv %s486
    %v488 = vmul.f32 %v487, %v239
    %s489 = sld [smem:[#allocation2 + $0x91]]
    %v490 = vstv %s489
    %v491 = vmul.f32 %v490, %v270
    %v492 = vadd.f32 %v488, %v491
    %s493 = sld [smem:[#allocation2 + $0x92]]
    %v494 = vstv %s493
    %v495 = vmul.f32 %v494, %v301
    %v496 = vadd.f32 %v492, %v495
    %s497 = sld [smem:[#allocation2 + $0x93]]
    %v498 = vstv %s497
    %v499 = vmul.f32 %v498, %v332
    %v500 = vadd.f32 %v496, %v499
    %s501 = sld [smem:[#allocation2 + $0x94]]
    %v502 = vstv %s501
    %v503 = vmul.f32 %v502, %v363
    %v504 = vadd.f32 %v500, %v503
    %s505 = sld [smem:[#allocation2 + $0x95]]
    %v506 = vstv %s505
    %v507 = vmul.f32 %v506, %v394
    %v508 = vadd.f32 %v504, %v507
    %s509 = sld [smem:[#allocation2 + $0x96]]
    %v510 = vstv %s509
    %v511 = vmul.f32 %v510, %v425
    %v512 = vadd.f32 %v508, %v511
    %s513 = sld [smem:[#allocation4 + $0x12]]
    %v514 = vstv %s513
    %v515 = vadd.f32 %v512, %v514
    %s516 = sld [smem:[#allocation2 + $0x98]]
    %v517 = vstv %s516
    %v518 = vmul.f32 %v517, %v239
    %s519 = sld [smem:[#allocation2 + $0x99]]
    %v520 = vstv %s519
    %v521 = vmul.f32 %v520, %v270
    %v522 = vadd.f32 %v518, %v521
    %s523 = sld [smem:[#allocation2 + $0x9a]]
    %v524 = vstv %s523
    %v525 = vmul.f32 %v524, %v301
    %v526 = vadd.f32 %v522, %v525
    %s527 = sld [smem:[#allocation2 + $0x9b]]
    %v528 = vstv %s527
    %v529 = vmul.f32 %v528, %v332
    %v530 = vadd.f32 %v526, %v529
    %s531 = sld [smem:[#allocation2 + $0x9c]]
    %v532 = vstv %s531
    %v533 = vmul.f32 %v532, %v363
    %v534 = vadd.f32 %v530, %v533
    %s535 = sld [smem:[#allocation2 + $0x9d]]
    %v536 = vstv %s535
    %v537 = vmul.f32 %v536, %v394
    %v538 = vadd.f32 %v534, %v537
    %s539 = sld [smem:[#allocation2 + $0x9e]]
    %v540 = vstv %s539
    %v541 = vmul.f32 %v540, %v425
    %v542 = vadd.f32 %v538, %v541
    %s543 = sld [smem:[#allocation4 + $0x13]]
    %v544 = vstv %s543
    %v545 = vadd.f32 %v542, %v544
    %546 = vst [vmem:[%s3] sm:$0xff] %v455
    %s547 = scalar_lea.vmem %s3, 8
    %548 = vst [vmem:[%s547] sm:$0xff] %v485
    %s549 = scalar_lea.vmem %s3, 16
    %550 = vst [vmem:[%s549] sm:$0xff] %v515
    %s551 = scalar_lea.vmem %s3, 24
    %552 = vst [vmem:[%s551] sm:$0xff] %v545
    // Predicated region
    $region22: #{net_forward_packed.1} parent=1 // pred_check
      _
    $region23: #{net_forward_packed.1} parent=1 // pred_check_branch
      %554 = sbr.rel (0) target = $region25
    $region24: #{net_forward_packed.1} parent=1 // pred_region
      _
    $region25: #{net_forward_packed.1} parent=1 // pred_fallthru
      _
    // Predicated region
    $region26: #{net_forward_packed.1} parent=1 // pred_check
      _
    $region27: #{net_forward_packed.1} parent=1 // pred_check_branch
      %556 = sbr.rel (0) target = $region29
    $region28: #{net_forward_packed.1} parent=1 // pred_region
      _
    $region29: #{net_forward_packed.1} parent=1 // pred_fallthru
      _
    %557 = vsyncpa [#allocation3], 1
    %558 = vsyncpa [#allocation5], 1

</llo_original>
